<compile_context>
chip_gen: v7x
topology: tpu7x:2x2x1
jax: 0.10.0
libtpu: 0.0.40
codegen_flags: <defaults>
</compile_context>

<pallas_src>
import math

import jax
import jax.numpy as jnp
from jax.experimental import pallas as pl
from jax.experimental.pallas import tpu as pltpu

_LANES = 1024        # wide, lane-dense last dim -> unmasked stores
_TILE_ROWS = 512     # 512 x 1024 f32 tile = 2 MiB; ~85% HBM roofline plateau


def _identity_kernel(x_ref, o_ref):
    # Pure pass-through: load the current VMEM tile and store it unchanged.
    o_ref[...] = x_ref[...]


def pallas_identity(x: jax.Array) -> jax.Array:
    """Identity of an arbitrary-shaped array through a Pallas TPU kernel.

    Flattens to a lane-dense (rows, 1024) slab (padding as needed), copies it
    through VMEM with large tiles and input/output aliasing, then restores the
    original shape.
    """
    orig_shape = x.shape
    total = math.prod(orig_shape)

    rows = pl.cdiv(total, _LANES)
    if rows <= _TILE_ROWS:
        # Small input: a single full-extent block (no per-step pipeline
        # overhead, no (8,128) divisibility requirement).
        tile_rows = rows
        padded_rows = rows
    else:
        # Large input: fixed 512-row tiles, grid >= 2 so both TCs (v7x) share
        # the mem-bound copy.
        tile_rows = _TILE_ROWS
        padded_rows = pl.cdiv(rows, _TILE_ROWS) * _TILE_ROWS
    padded_total = padded_rows * _LANES

    x_flat = x.reshape(-1)
    if padded_total != total:
        x_flat = jnp.pad(x_flat, (0, padded_total - total))
    x2d = x_flat.reshape(padded_rows, _LANES)

    grid = (padded_rows // tile_rows,)

    y2d = pl.pallas_call(
        _identity_kernel,
        out_shape=jax.ShapeDtypeStruct((padded_rows, _LANES), x2d.dtype),
        grid_spec=pltpu.PrefetchScalarGridSpec(
            num_scalar_prefetch=0,
            grid=grid,
            in_specs=[pl.BlockSpec((tile_rows, _LANES), lambda i: (i, 0))],
            out_specs=pl.BlockSpec((tile_rows, _LANES), lambda i: (i, 0)),
        ),
        # Alias the input buffer to the output: the identity never needs a
        # second HBM allocation.
        input_output_aliases={0: 0},
        compiler_params=pltpu.CompilerParams(
            dimension_semantics=("parallel",),
        ),
    )(x2d)

    y_flat = y2d.reshape(-1)
    if padded_total != total:
        y_flat = y_flat[:total]
    return y_flat.reshape(orig_shape)


class VGGModelPallas:
    """JAX/Pallas port of VGGModel.  __init__ defines no parameters."""

    def __init__(self):
        # No parameters in the reference module.
        pass

    def forward(self, x: jax.Array):
        # Reference forward() is `pass` -> returns None.  Per the perf review
        # we do NOT launch any kernel, sync, or verify here: the result would
        # be discarded, so any work is pure overhead.  The Pallas identity
        # kernel (the only compute this module could imply) is exercised and
        # validated in __main__ / tests instead.
        del x
        return None  # matches `def forward(self, x): pass`

    __call__ = forward


if __name__ == "__main__":
    key = jax.random.PRNGKey(0)
    # Small VGG-style NCHW input: batch=2, channels=4, spatial=16x16.
    x = jax.random.normal(key, (2, 4, 16, 16), dtype=jnp.float32)

    # Run the Pallas identity kernel once and block on the result.
    y = pallas_identity(x)
    y = jax.block_until_ready(y)
    if not bool(jnp.array_equal(y, x)):
        raise AssertionError("Pallas identity kernel mismatch")

    # Model forward keeps the exact PyTorch semantics (returns None).
    model = VGGModelPallas()
    out = model(x)
    assert out is None

    print("KERNEL_OK")
</pallas_src>

<mosaic_0001>
module attributes {stable_mosaic.version = 11 : i64} {
  func.func @_identity_kernel(%arg0: i32, %arg1: memref<2x1024xf32, #tpu.memory_space<vmem>>, %arg2: memref<2x1024xf32, #tpu.memory_space<vmem>>) attributes {dimension_semantics = [#tpu.dimension_semantics<parallel>], iteration_bounds = array<i64: 1>, scalar_prefetch = 0 : i64, scratch_operands = 0 : i64, tpu.core_type = #tpu.core_type<tc>, window_params = [{transform_indices = @transform_0, window_bounds = array<i64: 2, 1024>}, {transform_indices = @transform_1, window_bounds = array<i64: 2, 1024>}]} {
    %c0 = arith.constant 0 : index
    %c0_0 = arith.constant 0 : index
    %0 = vector.load %arg1[%c0, %c0_0] : memref<2x1024xf32, #tpu.memory_space<vmem>>, vector<2x1024xf32>
    %c0_1 = arith.constant 0 : index
    %c0_2 = arith.constant 0 : index
    %1 = vector.load %arg2[%c0_1, %c0_2] : memref<2x1024xf32, #tpu.memory_space<vmem>>, vector<2x1024xf32>
    tpu.vector_store %arg2[%c0_1, %c0_2], %0 {strides = array<i32>} : memref<2x1024xf32, #tpu.memory_space<vmem>>, vector<2x1024xf32>,
    return
  }
  func.func @transform_0(%arg0: i32) -> (i32, i32) {
    %c0_i32 = arith.constant 0 : i32
    %c0_i32_0 = arith.constant 0 : i32
    return %arg0, %c0_i32 : i32, i32
  }
  func.func @transform_1(%arg0: i32) -> (i32, i32) {
    %c0_i32 = arith.constant 0 : i32
    %c0_i32_0 = arith.constant 0 : i32
    return %arg0, %c0_i32 : i32, i32
  }
}

</mosaic_0001>

<llo_original>
// kernel: tpu_custom_call.1
$region0: #{tpu_custom_call.1}
  #allocation0 [shape = 'u32[]', space=smem, size = 0x4, offset = 0x4, fixed_abs, tag = 'smem constant byte address 0x4 - core index']
  #allocation1 [shape = 'u32[144,128]{1,0:T(1,128)}', space=vmem, size = 0x12000, scoped, tag = 'internal scratch']
  %s0 = inlined_call_operand.hbm [shape: f32[2,1024], index: 0, kind: input, shape index: {}, may-alias: {0,1}]
  %s1 = inlined_call_operand.hbm [shape: f32[2,1024], index: 1, kind: output, shape index: {}, may-alias: {0,1}]
  %s2 = sld [smem:[#allocation0]]
  $region18: #{tpu_custom_call.1} parent=0
    _
  %s4 = ssub.s32 1, %s2
  %s5 = scalar_select 0, %s4, %s2
  $region1: #{tpu_custom_call.1} parent=0
    #allocation2 [shape = 'u8[8192]{0}', space=vmem, size = 0x2000, scoped, tag = 'input window, operand 0, single buffered']
    #allocation3 [shape = 's32[1]{0}', space=sflag, size = 0x4, scoped, tag = 'scoped memory for tpu_custom_call.1']
    #allocation4 [shape = 's32[1]{0}', space=sflag, size = 0x4, scoped, tag = 'scoped memory for tpu_custom_call.1']
    #allocation5 [shape = 'u8[8192]{0}', space=vmem, size = 0x2000, scoped, tag = 'output window, operand 0, single buffered']
    %6 = vsyncpa [#allocation3], 0
    %7 = vsyncpa [#allocation4], 0
    // Predicated region
    $region2: #{tpu_custom_call.1} parent=1 // pred_check
      _
    $region3: #{tpu_custom_call.1} parent=1 // pred_check_branch
      %9 = sbr.rel (0) target = $region5
    $region4: #{tpu_custom_call.1} parent=1 // pred_region
      %s11 = ssub.s32 256, 256
      %12 = vsyncadd [#allocation3], %s11
      %s14 = sshll.u32 [#allocation2], 4
      %s15 = int_to_ptr.vmem [resolvable:$true] %s14
      %17 = dma.hbm_to_vmem [thread:$0]  %s0, 256, %s15, [#allocation3]
    $region5: #{tpu_custom_call.1} parent=1 // pred_fallthru
      _
    // Predicated region
    $region6: #{tpu_custom_call.1} parent=1 // pred_check
      _
    $region7: #{tpu_custom_call.1} parent=1 // pred_check_branch
      %19 = sbr.rel (0) target = $region9
    $region8: #{tpu_custom_call.1} parent=1 // pred_region
      %20 = dma.done [#allocation3], 256
    $region9: #{tpu_custom_call.1} parent=1 // pred_fallthru
      _
    %v21 = vld [vmem:[#allocation2] sm:$0xff]
    %v22 = vld [vmem:[#allocation2 + $0x8] sm:$0xff]
    %23 = vst [vmem:[#allocation5] sm:$0xff] %v21
    %24 = vst [vmem:[#allocation5 + $0x8] sm:$0xff] %v22
    // Predicated region
    $region10: #{tpu_custom_call.1} parent=1 // pred_check
      _
    $region11: #{tpu_custom_call.1} parent=1 // pred_check_branch
      %26 = sbr.rel (0) target = $region13
    $region12: #{tpu_custom_call.1} parent=1 // pred_region
      %s28 = ssub.s32 256, 256
      %29 = vsyncadd [#allocation4], %s28
      %s31 = sshll.u32 [#allocation5], 4
      %s32 = int_to_ptr.vmem [resolvable:$true] %s31
      %34 = dma.vmem_to_hbm [thread:$0]  %s32, 256, %s1, [#allocation4]
    $region13: #{tpu_custom_call.1} parent=1 // pred_fallthru
      _
    // Predicated region
    $region14: #{tpu_custom_call.1} parent=1 // pred_check
      _
    $region15: #{tpu_custom_call.1} parent=1 // pred_check_branch
      %36 = sbr.rel (0) target = $region17
    $region16: #{tpu_custom_call.1} parent=1 // pred_region
      %37 = dma.done [#allocation4], 256
    $region17: #{tpu_custom_call.1} parent=1 // pred_fallthru
      _
    %38 = vsyncpa [#allocation3], 1
    %39 = vsyncpa [#allocation4], 1

</llo_original>
